<compile_context>
chip_gen: v7x
topology: tpu7x:2x2x1
jax: 0.10.0
libtpu: 0.0.40
codegen_flags: <defaults>
</compile_context>

<pallas_src>
import functools
import math

import jax
import jax.numpy as jnp
from jax.experimental import pallas as pl
from jax.experimental.pallas import tpu as pltpu

NUM_CLASSES = 25
_ROW_PACK = 128                       # original rows packed per lane-dense row
_LANES = NUM_CLASSES * _ROW_PACK      # 3200 lanes per packed row (multiple of 128)


def _csd_loss_kernel(data_ref, mask_ref, loss_ref, num_acc, sq_acc, *,
                     g_valid, tile_r, tail_masked, sqrt_n):
    # data_ref: (tile_r, 3200) input dtype   -- lane-dense packed activations
    # mask_ref: (tile_r, 3200) int8          -- lane-dense one-hot selection mask
    # loss_ref: (1, 1) float32 SMEM          -- written once at the last step
    # num_acc / sq_acc: (1, 3200) float32 VMEM accumulators
    i = pl.program_id(0)

    @pl.when(i == 0)
    def _init():
        num_acc[...] = jnp.zeros_like(num_acc)
        sq_acc[...] = jnp.zeros_like(sq_acc)

    def _accum(o):
        sel = o * mask_ref[...].astype(jnp.float32)           # one-hot pick
        num_acc[...] += jnp.sum(sel, axis=0, keepdims=True)   # (1, 3200)
        sq_acc[...] += jnp.sum(o * o, axis=0, keepdims=True)  # (1, 3200)

    o = data_ref[...].astype(jnp.float32)

    if tail_masked:
        # Only the last block is partial; keep an unmasked fast path otherwise.
        last = pl.num_programs(0) - 1

        @pl.when(i != last)
        def _full():
            _accum(o)

        @pl.when(i == last)
        def _tail():
            rows = i * tile_r + jax.lax.broadcasted_iota(jnp.int32, (tile_r, 1), 0)
            # Zeroing `o` alone suffices: both o*mask and o*o vanish on padded rows
            # (the int8->f32 convert can never produce inf/nan).
            _accum(jnp.where(rows < g_valid, o, 0.0))
    else:
        _accum(o)

    @pl.when(i == pl.num_programs(0) - 1)
    def _finalize():
        numerator = jnp.sum(num_acc[...])
        # ||one_hot(target)||_F == sqrt(N): PyTorch's F.one_hot rejects labels
        # outside [0, 25), so every true row contributes exactly one 1.0.
        denominator = jnp.sqrt(jnp.sum(sq_acc[...])) * sqrt_n
        loss_ref[0, 0] = -jnp.log(numerator / denominator)


def csd_loss(output, target, *, tile_r=None):
    """output: (N, 25) float array (f32/bf16/...); target: (N,) int labels in [0, 25)."""
    n, c = output.shape
    assert c == NUM_CLASSES
    target = target.astype(jnp.int32)

    # Pack 128 original rows per lane-dense row.  Free (metadata-only reshape) when
    # N % 128 == 0; otherwise pad once with zero rows (labels padded with -1 so the
    # one-hot mask is all-zero there and padded rows contribute nothing).
    n_pad = ((n + _ROW_PACK - 1) // _ROW_PACK) * _ROW_PACK
    if n_pad != n:
        output = jnp.pad(output, ((0, n_pad - n), (0, 0)))
        target = jnp.pad(target, (0, n_pad - n), constant_values=-1)

    # Lane-dense int8 one-hot mask, built by XLA outside the kernel (cheap) and
    # streamed alongside the data (replaces the width-1 label block).
    onehot = (target[:, None] ==
              jnp.arange(NUM_CLASSES, dtype=jnp.int32)[None, :]).astype(jnp.int8)

    g = n_pad // _ROW_PACK
    data = output.reshape(g, _LANES)
    mask = onehot.reshape(g, _LANES)

    itemsize = jnp.dtype(output.dtype).itemsize
    if tile_r is None:
        # ~(itemsize + 1) bytes per element per (data+mask) buffer pair; budget
        # ~6 MiB per pair so the double-buffered footprint stays ~12 MiB -- safe
        # under v5e's 16 MiB scoped default and far under v7x's 64 MiB physical.
        budget = 6 * 1024 * 1024
        tile_r = max(32, min(1024, budget // (_LANES * (itemsize + 1))))
        tile_r = (tile_r // 32) * 32
    tile_r = int(min(tile_r, g))
    if tile_r < g:
        # int8 mask packs 32 rows per sublane tile -> keep block rows a multiple of 32
        # (a block equal to the full array dim is exempt).
        tile_r = min(max(32, (tile_r // 32) * 32), g)

    num_blocks = pl.cdiv(g, tile_r)
    tail_masked = (g % tile_r) != 0

    cost = pl.CostEstimate(
        flops=4 * n * c,
        transcendentals=2,
        bytes_accessed=g * _LANES * (itemsize + 1) + 4,
    )

    kernel = functools.partial(
        _csd_loss_kernel,
        g_valid=g, tile_r=tile_r, tail_masked=tail_masked,
        sqrt_n=float(math.sqrt(n)))

    # TODO(synk): on v7x a leading CORE_PARALLEL axis (2 TCs) with per-core partial
    # sums could add ~1.5-2x for very large N; kept single-core for portability.
    loss = pl.pallas_call(
        kernel,
        out_shape=jax.ShapeDtypeStruct((1, 1), jnp.float32),
        grid_spec=pltpu.PrefetchScalarGridSpec(
            num_scalar_prefetch=0,
            grid=(num_blocks,),
            in_specs=[
                pl.BlockSpec((tile_r, _LANES), lambda i: (i, 0)),  # data tiles
                pl.BlockSpec((tile_r, _LANES), lambda i: (i, 0)),  # int8 one-hot tiles
            ],
            out_specs=pl.BlockSpec((1, 1), lambda i: (0, 0),
                                   memory_space=pltpu.SMEM),
            scratch_shapes=[
                pltpu.VMEM((1, _LANES), jnp.float32),   # numerator partials
                pltpu.VMEM((1, _LANES), jnp.float32),   # sum(o*o) partials
            ],
        ),
        compiler_params=pltpu.CompilerParams(
            dimension_semantics=("arbitrary",),
            vmem_limit_bytes=32 * 1024 * 1024),
        cost_estimate=cost,
    )(data, mask)
    return loss[0, 0]


def _reference_csd_loss(output, target):
    # Pure-JAX reference mirroring the PyTorch module.
    o = output.astype(jnp.float32)
    t = jax.nn.one_hot(target, NUM_CLASSES, dtype=jnp.float32)
    num = jnp.sum(o * t)
    den = jnp.linalg.norm(o.ravel()) * jnp.linalg.norm(t.ravel())
    return -jnp.mean(jnp.log(num / den))


if __name__ == "__main__":
    def _check(n, dtype, tile_r=None, seed=0):
        k1, k2 = jax.random.split(jax.random.PRNGKey(seed))
        # Positive "probability-like" outputs so log() is well defined (matches
        # the intended use of the PyTorch loss on softmax-style outputs).
        out = jax.random.uniform(k1, (n, NUM_CLASSES), dtype=jnp.float32,
                                 minval=0.05, maxval=1.0).astype(dtype)
        tgt = jax.random.randint(k2, (n,), 0, NUM_CLASSES, dtype=jnp.int32)
        got = csd_loss(out, tgt, tile_r=tile_r)
        jax.block_until_ready(got)
        want = _reference_csd_loss(out, tgt)
        assert jnp.allclose(got, want, rtol=1e-5, atol=1e-5), (n, dtype, got, want)

    _check(8, jnp.float32, seed=0)                  # tiny ragged N -> one packed row
    _check(8192, jnp.float32, tile_r=32, seed=1)    # multi-step grid, exact tiling
    _check(10000, jnp.float32, tile_r=32, seed=2)   # multi-step + partial tail block
    _check(4096, jnp.bfloat16, seed=3)              # bf16 stream, default tile size

    print("KERNEL_OK")
</pallas_src>

<mosaic_0001>
module attributes {stable_mosaic.version = 11 : i64} {
  func.func @_csd_loss_kernel(%arg0: i32, %arg1: memref<1x3200xf32, #tpu.memory_space<vmem>>, %arg2: memref<1x3200xi8, #tpu.memory_space<vmem>>, %arg3: memref<1x1xf32, #tpu.memory_space<smem>>, %arg4: memref<1x3200xf32, #tpu.memory_space<vmem>>, %arg5: memref<1x3200xf32, #tpu.memory_space<vmem>>) attributes {dimension_semantics = [#tpu.dimension_semantics<arbitrary>], iteration_bounds = array<i64: 1>, scalar_prefetch = 0 : i64, scratch_operands = 2 : i64, tpu.core_type = #tpu.core_type<tc>, window_params = [{transform_indices = @transform_0, window_bounds = array<i64: 1, 3200>}, {transform_indices = @transform_1, window_bounds = array<i64: 1, 3200>}, {transform_indices = @transform_2, window_bounds = array<i64: 1, 1>}]} {
    %c0_i32 = arith.constant 0 : i32
    %0 = arith.cmpi eq, %arg0, %c0_i32 : i32
    %1 = arith.extui %0 : i1 to i32
    %c0_i32_0 = arith.constant 0 : i32
    %2 = arith.cmpi ne, %1, %c0_i32_0 : i32
    scf.if %2 {
      %cst_15 = arith.constant 0.000000e+00 : f32
      %21 = vector.broadcast %cst_15 : f32 to vector<1x3200xf32>
      %c0_16 = arith.constant 0 : index
      %c0_17 = arith.constant 0 : index
      %22 = vector.load %arg4[%c0_16, %c0_17] : memref<1x3200xf32, #tpu.memory_space<vmem>>, vector<1x3200xf32>
      tpu.vector_store %arg4[%c0_16, %c0_17], %21 {strides = array<i32>} : memref<1x3200xf32, #tpu.memory_space<vmem>>, vector<1x3200xf32>,
      %cst_18 = arith.constant 0.000000e+00 : f32
      %23 = vector.broadcast %cst_18 : f32 to vector<1x3200xf32>
      %c0_19 = arith.constant 0 : index
      %c0_20 = arith.constant 0 : index
      %24 = vector.load %arg5[%c0_19, %c0_20] : memref<1x3200xf32, #tpu.memory_space<vmem>>, vector<1x3200xf32>
      tpu.vector_store %arg5[%c0_19, %c0_20], %23 {strides = array<i32>} : memref<1x3200xf32, #tpu.memory_space<vmem>>, vector<1x3200xf32>,
    } else {
    }
    %c0 = arith.constant 0 : index
    %c0_1 = arith.constant 0 : index
    %3 = vector.load %arg1[%c0, %c0_1] : memref<1x3200xf32, #tpu.memory_space<vmem>>, vector<1x3200xf32>
    %c0_2 = arith.constant 0 : index
    %c0_3 = arith.constant 0 : index
    %4 = vector.load %arg2[%c0_2, %c0_3] : memref<1x3200xi8, #tpu.memory_space<vmem>>, vector<1x3200xi8>
    %5 = arith.sitofp %4 : vector<1x3200xi8> to vector<1x3200xf32>
    %6 = arith.mulf %3, %5 : vector<1x3200xf32>
    %c0_4 = arith.constant 0 : index
    %c0_5 = arith.constant 0 : index
    %7 = vector.load %arg4[%c0_4, %c0_5] : memref<1x3200xf32, #tpu.memory_space<vmem>>, vector<1x3200xf32>
    %cst = arith.constant dense<0.000000e+00> : vector<3200xf32>
    %8 = vector.multi_reduction <add>, %6, %cst [0] : vector<1x3200xf32> to vector<3200xf32>
    %9 = vector.shape_cast %8 : vector<3200xf32> to vector<1x3200xf32>
    %10 = arith.addf %7, %9 : vector<1x3200xf32>
    %c0_6 = arith.constant 0 : index
    %c0_7 = arith.constant 0 : index
    %11 = vector.load %arg4[%c0_6, %c0_7] : memref<1x3200xf32, #tpu.memory_space<vmem>>, vector<1x3200xf32>
    tpu.vector_store %arg4[%c0_6, %c0_7], %10 {strides = array<i32>} : memref<1x3200xf32, #tpu.memory_space<vmem>>, vector<1x3200xf32>,
    %c0_8 = arith.constant 0 : index
    %c0_9 = arith.constant 0 : index
    %12 = vector.load %arg5[%c0_8, %c0_9] : memref<1x3200xf32, #tpu.memory_space<vmem>>, vector<1x3200xf32>
    %13 = arith.mulf %3, %3 : vector<1x3200xf32>
    %cst_10 = arith.constant dense<0.000000e+00> : vector<3200xf32>
    %14 = vector.multi_reduction <add>, %13, %cst_10 [0] : vector<1x3200xf32> to vector<3200xf32>
    %15 = vector.shape_cast %14 : vector<3200xf32> to vector<1x3200xf32>
    %16 = arith.addf %12, %15 : vector<1x3200xf32>
    %c0_11 = arith.constant 0 : index
    %c0_12 = arith.constant 0 : index
    %17 = vector.load %arg5[%c0_11, %c0_12] : memref<1x3200xf32, #tpu.memory_space<vmem>>, vector<1x3200xf32>
    tpu.vector_store %arg5[%c0_11, %c0_12], %16 {strides = array<i32>} : memref<1x3200xf32, #tpu.memory_space<vmem>>, vector<1x3200xf32>,
    %c0_i32_13 = arith.constant 0 : i32
    %18 = arith.cmpi eq, %arg0, %c0_i32_13 : i32
    %19 = arith.extui %18 : i1 to i32
    %c0_i32_14 = arith.constant 0 : i32
    %20 = arith.cmpi ne, %19, %c0_i32_14 : i32
    scf.if %20 {
      %c0_15 = arith.constant 0 : index
      %c0_16 = arith.constant 0 : index
      %21 = vector.load %arg4[%c0_15, %c0_16] : memref<1x3200xf32, #tpu.memory_space<vmem>>, vector<1x3200xf32>
      %22 = vector.shape_cast %21 : vector<1x3200xf32> to vector<1x1x3200xf32>
      %cst_17 = arith.constant dense<0.000000e+00> : vector<1xf32>
      %23 = vector.multi_reduction <add>, %22, %cst_17 [1, 2] : vector<1x1x3200xf32> to vector<1xf32>
      %24 = vector.shape_cast %23 : vector<1xf32> to vector<1x1x1xf32>
      %25 = vector.extract %24[0, 0, 0] : f32 from vector<1x1x1xf32>
      %c0_18 = arith.constant 0 : index
      %c0_19 = arith.constant 0 : index
      %26 = vector.load %arg5[%c0_18, %c0_19] : memref<1x3200xf32, #tpu.memory_space<vmem>>, vector<1x3200xf32>
      %27 = vector.shape_cast %26 : vector<1x3200xf32> to vector<1x1x3200xf32>
      %cst_20 = arith.constant dense<0.000000e+00> : vector<1xf32>
      %28 = vector.multi_reduction <add>, %27, %cst_20 [1, 2] : vector<1x1x3200xf32> to vector<1xf32>
      %29 = vector.shape_cast %28 : vector<1xf32> to vector<1x1x1xf32>
      %30 = vector.extract %29[0, 0, 0] : f32 from vector<1x1x1xf32>
      %31 = math.sqrt %30 : f32
      %cst_21 = arith.constant 2.82842708 : f32
      %32 = arith.mulf %31, %cst_21 : f32
      %33 = arith.divf %25, %32 : f32
      %34 = math.log %33 : f32
      %cst_22 = arith.constant 0.000000e+00 : f32
      %35 = arith.subf %cst_22, %34 : f32
      %c0_23 = arith.constant 0 : index
      %c0_24 = arith.constant 0 : index
      %36 = memref.load %arg3[%c0_23, %c0_24] : memref<1x1xf32, #tpu.memory_space<smem>>
      memref.store %35, %arg3[%c0_23, %c0_24] : memref<1x1xf32, #tpu.memory_space<smem>>
    } else {
    }
    return
  }
  func.func @transform_0(%arg0: i32) -> (i32, i32) {
    %c0_i32 = arith.constant 0 : i32
    %c0_i32_0 = arith.constant 0 : i32
    return %arg0, %c0_i32 : i32, i32
  }
  func.func @transform_1(%arg0: i32) -> (i32, i32) {
    %c0_i32 = arith.constant 0 : i32
    %c0_i32_0 = arith.constant 0 : i32
    return %arg0, %c0_i32 : i32, i32
  }
  func.func @transform_2(%arg0: i32) -> (i32, i32) {
    %c0_i32 = arith.constant 0 : i32
    %c0_i32_0 = arith.constant 0 : i32
    %c0_i32_1 = arith.constant 0 : i32
    return %c0_i32, %c0_i32_0 : i32, i32
  }
}

</mosaic_0001>

<llo_original>
// kernel: tpu_custom_call.1
$region0: #{tpu_custom_call.1}
  #allocation0 [shape = 'u32[]', space=smem, size = 0x4, offset = 0x4, fixed_abs, tag = 'smem constant byte address 0x4 - core index']
  #allocation1 [shape = 'u32[144,128]{1,0:T(1,128)}', space=vmem, size = 0x12000, scoped, tag = 'internal scratch']
  #allocation2 [shape = 'f32[1,3200]{1,0:T(1,128)}', space=vmem, size = 0x3200, scoped, tag = 'scratch operand']
  #allocation3 [shape = 'f32[1,3200]{1,0:T(1,128)}', space=vmem, size = 0x3200, scoped, tag = 'scratch operand']
  %s0 = inlined_call_operand.hbm [shape: f32[1,3200], index: 0, kind: input, shape index: {}]
  %s1 = inlined_call_operand.hbm [shape: s8[1,3200], index: 1, kind: input, shape index: {}]
  %s2 = inlined_call_operand.hbm [shape: f32[1,1], index: 2, kind: output, shape index: {}]
  %s3 = sld [smem:[#allocation0]]
  $region34: #{tpu_custom_call.1} parent=0
    _
  %s5 = ssub.s32 1, %s3
  %s6 = scalar_select 0, %s5, %s3
  $region1: #{tpu_custom_call.1} parent=0
    #allocation4 [shape = 'u8[12800]{0}', space=vmem, size = 0x3400, scoped, tag = 'input window, operand 0, single buffered']
    #allocation5 [shape = 's32[1]{0}', space=sflag, size = 0x4, scoped, tag = 'scoped memory for tpu_custom_call.1']
    #allocation6 [shape = 's32[1]{0}', space=sflag, size = 0x4, scoped, tag = 'scoped memory for tpu_custom_call.1']
    #allocation7 [shape = 'u8[12800]{0}', space=vmem, size = 0x3400, scoped, tag = 'input window, operand 1, single buffered']
    #allocation8 [shape = 's32[1]{0}', space=sflag, size = 0x4, scoped, tag = 'scoped memory for tpu_custom_call.1']
    #allocation9 [shape = 'u8[512]{0}', space=smem, size = 0x200, scoped, tag = 'output window, operand 0, single buffered']
    %7 = vsyncpa [#allocation5], 0
    %8 = vsyncpa [#allocation8], 0
    %9 = vsyncpa [#allocation6], 0
    // Predicated region
    $region2: #{tpu_custom_call.1} parent=1 // pred_check
      _
    $region3: #{tpu_custom_call.1} parent=1 // pred_check_branch
      %11 = sbr.rel (0) target = $region5
    $region4: #{tpu_custom_call.1} parent=1 // pred_region
      %s13 = ssub.s32 400, 400
      %14 = vsyncadd [#allocation5], %s13
      %s16 = sshll.u32 [#allocation4], 4
      %s17 = int_to_ptr.vmem [resolvable:$true] %s16
      %19 = dma.hbm_to_vmem [thread:$0]  %s0, 400, %s17, [#allocation5]
    $region5: #{tpu_custom_call.1} parent=1 // pred_fallthru
      _
    // Predicated region
    $region6: #{tpu_custom_call.1} parent=1 // pred_check
      _
    $region7: #{tpu_custom_call.1} parent=1 // pred_check_branch
      %21 = sbr.rel (0) target = $region9
    $region8: #{tpu_custom_call.1} parent=1 // pred_region
      %s23 = ssub.s32 400, 400
      %24 = vsyncadd [#allocation8], %s23
      %s26 = sshll.u32 [#allocation7], 4
      %s27 = int_to_ptr.vmem [resolvable:$true] %s26
      %29 = dma.hbm_to_vmem [thread:$0]  %s1, 400, %s27, [#allocation8]
    $region9: #{tpu_custom_call.1} parent=1 // pred_fallthru
      _
    // Predicated region
    $region10: #{tpu_custom_call.1} parent=1 // pred_check
      _
    $region11: #{tpu_custom_call.1} parent=1 // pred_check_branch
      %31 = sbr.rel (0) target = $region13
    $region12: #{tpu_custom_call.1} parent=1 // pred_region
      %32 = dma.done [#allocation5], 400
    $region13: #{tpu_custom_call.1} parent=1 // pred_fallthru
      _
    // Predicated region
    $region14: #{tpu_custom_call.1} parent=1 // pred_check
      _
    $region15: #{tpu_custom_call.1} parent=1 // pred_check_branch
      %34 = sbr.rel (0) target = $region17
    $region16: #{tpu_custom_call.1} parent=1 // pred_region
      %35 = dma.done [#allocation8], 400
    $region17: #{tpu_custom_call.1} parent=1 // pred_fallthru
      _
    %p36 = scmp.eq.s32.totalorder 0, 0
    // Predicated region
    $region18: #{tpu_custom_call.1} parent=1 // pred_check
      %p37 = pneg %p36
    $region19: #{tpu_custom_call.1} parent=1 // pred_check_branch
      %39 = sbr.rel (%p37) target = $region21
    $region20: #{tpu_custom_call.1} parent=1 // pred_region
      %40 = vst [vmem:[#allocation2] sm:$0xff] 0.0
      %41 = vst [vmem:[#allocation2 + $0x8] sm:$0xff] 0.0
      %42 = vst [vmem:[#allocation2 + $0x10] sm:$0xff] 0.0
      %v43 = vlaneseq
      %vm44 = vcmp.ge.s32.totalorder %v43, 0
      %vm45 = vcmp.lt.s32.totalorder %v43, 128
      %vm46 = vmand %vm44, %vm45
      %47 = vst.msk [vmem:[#allocation2 + $0x18] sm:$0x1] %vm46, 0.0
      %48 = vst [vmem:[#allocation3] sm:$0xff] 0.0
      %49 = vst [vmem:[#allocation3 + $0x8] sm:$0xff] 0.0
      %50 = vst [vmem:[#allocation3 + $0x10] sm:$0xff] 0.0
      %51 = vst.msk [vmem:[#allocation3 + $0x18] sm:$0x1] %vm46, 0.0
    $region21: #{tpu_custom_call.1} parent=1 // pred_fallthru
      _
    %v52 = vld [vmem:[#allocation4] sm:$0xff]
    %v53 = vld [vmem:[#allocation4 + $0x8] sm:$0xff]
    %v54 = vld [vmem:[#allocation4 + $0x10] sm:$0xff]
    %v55 = vld [vmem:[#allocation4 + $0x18] sm:$0x1]
    %v56 = vld [vmem:[#allocation7] sm:$0xff]
    %v57 = vld [vmem:[#allocation7 + $0x8] sm:$0xff]
    %v58 = vld [vmem:[#allocation7 + $0x10] sm:$0xff]
    %v59 = vld [vmem:[#allocation7 + $0x18] sm:$0x1]
    %v60 = vunpack.c.0.s8 %v56
    %v61 = vunpack.c.1.s8 %v56
    %v62 = vunpack.c.2.s8 %v56
    %v63 = vunpack.c.3.s8 %v56
    %v64 = vunpack.c.0.s8 %v57
    %v65 = vunpack.c.1.s8 %v57
    %v66 = vunpack.c.2.s8 %v57
    %v67 = vunpack.c.3.s8 %v57
    %v68 = vunpack.c.0.s8 %v58
    %v69 = vunpack.c.1.s8 %v58
    %v70 = vunpack.c.2.s8 %v58
    %v71 = vunpack.c.3.s8 %v58
    %v72 = vunpack.c.0.s8 %v59
    %v73 = vcvt.s32.f32 %v60
    %v74 = vcvt.s32.f32 %v61
    %v75 = vcvt.s32.f32 %v62
    %v76 = vcvt.s32.f32 %v63
    %v77 = vcvt.s32.f32 %v64
    %v78 = vcvt.s32.f32 %v65
    %v79 = vcvt.s32.f32 %v66
    %v80 = vcvt.s32.f32 %v67
    %v81 = vcvt.s32.f32 %v68
    %v82 = vcvt.s32.f32 %v69
    %v83 = vcvt.s32.f32 %v70
    %v84 = vcvt.s32.f32 %v71
    %v85 = vcvt.s32.f32 %v72
    %v100 = vunpack.c.l.s4 1966171168
    %v101 = vunpack.c.0.s8 %v100
    %v102 = vlaneseq
    %v103 = vshrl.u32 %v102, 7
    %v104 = vsub.s32 %v101, %v103
    %v105 = vrot.slane %v73, %v104
    %v107 = vunpack.c.l.s4 1966171168
    %v108 = vunpack.c.0.s8 %v107
    %v109 = vlaneseq
    %v110 = vshrl.u32 %v109, 7
    %v111 = vsub.s32 %v108, %v110
    %v112 = vrot.slane %v74, %v111
    %v114 = vunpack.c.l.s4 1966171168
    %v115 = vunpack.c.0.s8 %v114
    %v116 = vlaneseq
    %v117 = vshrl.u32 %v116, 7
    %v118 = vsub.s32 %v115, %v117
    %v119 = vrot.slane %v75, %v118
    %v121 = vunpack.c.l.s4 1966171168
    %v122 = vunpack.c.0.s8 %v121
    %v123 = vlaneseq
    %v124 = vshrl.u32 %v123, 7
    %v125 = vsub.s32 %v122, %v124
    %v126 = vrot.slane %v76, %v125
    %v127 = vcombine.low %v105, %v112
    %v128 = vcombine.low %v119, %v126
    %v130 = vunpack.c.l.s4 1966171168
    %v131 = vunpack.c.0.s8 %v130
    %v132 = vlaneseq
    %v133 = vshrl.u32 %v132, 7
    %v134 = vsub.s32 %v131, %v133
    %v135 = vrot.slane %v127, %v134
    %v137 = vunpack.c.l.s4 1966171168
    %v138 = vunpack.c.0.s8 %v137
    %v139 = vlaneseq
    %v140 = vshrl.u32 %v139, 7
    %v141 = vsub.s32 %v138, %v140
    %v142 = vrot.slane %v128, %v141
    %v143 = vcombine.low %v135, %v142
    %v145 = vunpack.c.l.s4 1966171168
    %v146 = vunpack.c.0.s8 %v145
    %v147 = vlaneseq
    %v148 = vshrl.u32 %v147, 7
    %v149 = vsub.s32 %v146, %v148
    %v150 = vrot.slane %v77, %v149
    %v152 = vunpack.c.l.s4 1966171168
    %v153 = vunpack.c.0.s8 %v152
    %v154 = vlaneseq
    %v155 = vshrl.u32 %v154, 7
    %v156 = vsub.s32 %v153, %v155
    %v157 = vrot.slane %v78, %v156
    %v159 = vunpack.c.l.s4 1966171168
    %v160 = vunpack.c.0.s8 %v159
    %v161 = vlaneseq
    %v162 = vshrl.u32 %v161, 7
    %v163 = vsub.s32 %v160, %v162
    %v164 = vrot.slane %v79, %v163
    %v166 = vunpack.c.l.s4 1966171168
    %v167 = vunpack.c.0.s8 %v166
    %v168 = vlaneseq
    %v169 = vshrl.u32 %v168, 7
    %v170 = vsub.s32 %v167, %v169
    %v171 = vrot.slane %v80, %v170
    %v172 = vcombine.low %v150, %v157
    %v173 = vcombine.low %v164, %v171
    %v175 = vunpack.c.l.s4 1966171168
    %v176 = vunpack.c.0.s8 %v175
    %v177 = vlaneseq
    %v178 = vshrl.u32 %v177, 7
    %v179 = vsub.s32 %v176, %v178
    %v180 = vrot.slane %v172, %v179
    %v182 = vunpack.c.l.s4 1966171168
    %v183 = vunpack.c.0.s8 %v182
    %v184 = vlaneseq
    %v185 = vshrl.u32 %v184, 7
    %v186 = vsub.s32 %v183, %v185
    %v187 = vrot.slane %v173, %v186
    %v188 = vcombine.low %v180, %v187
    %v190 = vunpack.c.l.s4 1966171168
    %v191 = vunpack.c.0.s8 %v190
    %v192 = vlaneseq
    %v193 = vshrl.u32 %v192, 7
    %v194 = vsub.s32 %v191, %v193
    %v195 = vrot.slane %v81, %v194
    %v197 = vunpack.c.l.s4 1966171168
    %v198 = vunpack.c.0.s8 %v197
    %v199 = vlaneseq
    %v200 = vshrl.u32 %v199, 7
    %v201 = vsub.s32 %v198, %v200
    %v202 = vrot.slane %v82, %v201
    %v204 = vunpack.c.l.s4 1966171168
    %v205 = vunpack.c.0.s8 %v204
    %v206 = vlaneseq
    %v207 = vshrl.u32 %v206, 7
    %v208 = vsub.s32 %v205, %v207
    %v209 = vrot.slane %v83, %v208
    %v211 = vunpack.c.l.s4 1966171168
    %v212 = vunpack.c.0.s8 %v211
    %v213 = vlaneseq
    %v214 = vshrl.u32 %v213, 7
    %v215 = vsub.s32 %v212, %v214
    %v216 = vrot.slane %v84, %v215
    %v217 = vcombine.low %v195, %v202
    %v218 = vcombine.low %v209, %v216
    %v220 = vunpack.c.l.s4 1966171168
    %v221 = vunpack.c.0.s8 %v220
    %v222 = vlaneseq
    %v223 = vshrl.u32 %v222, 7
    %v224 = vsub.s32 %v221, %v223
    %v225 = vrot.slane %v217, %v224
    %v227 = vunpack.c.l.s4 1966171168
    %v228 = vunpack.c.0.s8 %v227
    %v229 = vlaneseq
    %v230 = vshrl.u32 %v229, 7
    %v231 = vsub.s32 %v228, %v230
    %v232 = vrot.slane %v218, %v231
    %v233 = vcombine.low %v225, %v232
    %v235 = vunpack.c.l.s4 1966171168
    %v236 = vunpack.c.0.s8 %v235
    %v237 = vlaneseq
    %v238 = vshrl.u32 %v237, 7
    %v239 = vsub.s32 %v236, %v238
    %v240 = vrot.slane %v85, %v239
    %v242 = vunpack.c.l.s4 1966171168
    %v243 = vunpack.c.0.s8 %v242
    %v244 = vlaneseq
    %v245 = vshrl.u32 %v244, 7
    %v246 = vsub.s32 %v243, %v245
    %v247 = vrot.slane %v240, %v246
    %v252 = vmul.f32 %v52, %v143
    %v253 = vmul.f32 %v53, %v188
    %v254 = vmul.f32 %v54, %v233
    %v255 = vmul.f32 %v55, %v247
    %v256 = vld [vmem:[#allocation2] sm:$0xff]
    %v257 = vld [vmem:[#allocation2 + $0x8] sm:$0xff]
    %v258 = vld [vmem:[#allocation2 + $0x10] sm:$0xff]
    %v259 = vld [vmem:[#allocation2 + $0x18] sm:$0x1]
    %v260 = vadd.f32 %v252, 0.0
    %v261 = vadd.f32 %v253, 0.0
    %v262 = vadd.f32 %v254, 0.0
    %v263 = vadd.f32 %v255, 0.0
    %v264 = vadd.f32 %v256, %v260
    %v265 = vadd.f32 %v257, %v261
    %v266 = vadd.f32 %v258, %v262
    %v267 = vadd.f32 %v259, %v263
    %268 = vst [vmem:[#allocation2] sm:$0xff] %v264
    %269 = vst [vmem:[#allocation2 + $0x8] sm:$0xff] %v265
    %270 = vst [vmem:[#allocation2 + $0x10] sm:$0xff] %v266
    %v271 = vlaneseq
    %vm272 = vcmp.ge.s32.totalorder %v271, 0
    %vm273 = vcmp.lt.s32.totalorder %v271, 128
    %vm274 = vmand %vm272, %vm273
    %275 = vst.msk [vmem:[#allocation2 + $0x18] sm:$0x1] %vm274, %v267
    %v276 = vld [vmem:[#allocation3] sm:$0xff]
    %v277 = vld [vmem:[#allocation3 + $0x8] sm:$0xff]
    %v278 = vld [vmem:[#allocation3 + $0x10] sm:$0xff]
    %v279 = vld [vmem:[#allocation3 + $0x18] sm:$0x1]
    %v280 = vmul.f32 %v52, %v52
    %v281 = vmul.f32 %v53, %v53
    %v282 = vmul.f32 %v54, %v54
    %v283 = vmul.f32 %v55, %v55
    %v284 = vadd.f32 %v280, 0.0
    %v285 = vadd.f32 %v281, 0.0
    %v286 = vadd.f32 %v282, 0.0
    %v287 = vadd.f32 %v283, 0.0
    %v288 = vadd.f32 %v276, %v284
    %v289 = vadd.f32 %v277, %v285
    %v290 = vadd.f32 %v278, %v286
    %v291 = vadd.f32 %v279, %v287
    %292 = vst [vmem:[#allocation3] sm:$0xff] %v288
    %293 = vst [vmem:[#allocation3 + $0x8] sm:$0xff] %v289
    %294 = vst [vmem:[#allocation3 + $0x10] sm:$0xff] %v290
    %295 = vst.msk [vmem:[#allocation3 + $0x18] sm:$0x1] %vm274, %v291
    // Predicated region
    $region22: #{tpu_custom_call.1} parent=1 // pred_check
      %p296 = pneg %p36
    $region23: #{tpu_custom_call.1} parent=1 // pred_check_branch
      %298 = sbr.rel (%p296) target = $region25
    $region24: #{tpu_custom_call.1} parent=1 // pred_region
      %v299 = vld [vmem:[#allocation2] sm:$0xff]
      %v300 = vld [vmem:[#allocation2 + $0x8] sm:$0xff]
      %v301 = vld [vmem:[#allocation2 + $0x10] sm:$0xff]
      %v302 = vld [vmem:[#allocation2 + $0x18] sm:$0x1]
      %v307 = vlaneseq
      %v308 = vshrl.u32 %v307, 7
      %v309 = vsub.s32 0, %v308
      %v310 = vrot.slane %v299, %v309
      %v311 = vlaneseq
      %v312 = vshrl.u32 %v311, 7
      %v313 = vsub.s32 1, %v312
      %v314 = vrot.slane %v299, %v313
      %v315 = vlaneseq
      %v316 = vshrl.u32 %v315, 7
      %v317 = vsub.s32 2, %v316
      %v318 = vrot.slane %v299, %v317
      %v319 = vlaneseq
      %v320 = vshrl.u32 %v319, 7
      %v321 = vsub.s32 3, %v320
      %v322 = vrot.slane %v299, %v321
      %v323 = vlaneseq
      %v324 = vshrl.u32 %v323, 7
      %v325 = vsub.s32 4, %v324
      %v326 = vrot.slane %v299, %v325
      %v327 = vlaneseq
      %v328 = vshrl.u32 %v327, 7
      %v329 = vsub.s32 5, %v328
      %v330 = vrot.slane %v299, %v329
      %v331 = vlaneseq
      %v332 = vshrl.u32 %v331, 7
      %v333 = vsub.s32 6, %v332
      %v334 = vrot.slane %v299, %v333
      %v335 = vlaneseq
      %v336 = vshrl.u32 %v335, 7
      %v337 = vsub.s32 7, %v336
      %v338 = vrot.slane %v299, %v337
      %v339 = vlaneseq
      %v340 = vshrl.u32 %v339, 7
      %v341 = vsub.s32 0, %v340
      %v342 = vrot.slane %v300, %v341
      %v343 = vlaneseq
      %v344 = vshrl.u32 %v343, 7
      %v345 = vsub.s32 1, %v344
      %v346 = vrot.slane %v300, %v345
      %v347 = vlaneseq
      %v348 = vshrl.u32 %v347, 7
      %v349 = vsub.s32 2, %v348
      %v350 = vrot.slane %v300, %v349
      %v351 = vlaneseq
      %v352 = vshrl.u32 %v351, 7
      %v353 = vsub.s32 3, %v352
      %v354 = vrot.slane %v300, %v353
      %v355 = vlaneseq
      %v356 = vshrl.u32 %v355, 7
      %v357 = vsub.s32 4, %v356
      %v358 = vrot.slane %v300, %v357
      %v359 = vlaneseq
      %v360 = vshrl.u32 %v359, 7
      %v361 = vsub.s32 5, %v360
      %v362 = vrot.slane %v300, %v361
      %v363 = vlaneseq
      %v364 = vshrl.u32 %v363, 7
      %v365 = vsub.s32 6, %v364
      %v366 = vrot.slane %v300, %v365
      %v367 = vlaneseq
      %v368 = vshrl.u32 %v367, 7
      %v369 = vsub.s32 7, %v368
      %v370 = vrot.slane %v300, %v369
      %v371 = vlaneseq
      %v372 = vshrl.u32 %v371, 7
      %v373 = vsub.s32 0, %v372
      %v374 = vrot.slane %v301, %v373
      %v375 = vlaneseq
      %v376 = vshrl.u32 %v375, 7
      %v377 = vsub.s32 1, %v376
      %v378 = vrot.slane %v301, %v377
      %v379 = vlaneseq
      %v380 = vshrl.u32 %v379, 7
      %v381 = vsub.s32 2, %v380
      %v382 = vrot.slane %v301, %v381
      %v383 = vlaneseq
      %v384 = vshrl.u32 %v383, 7
      %v385 = vsub.s32 3, %v384
      %v386 = vrot.slane %v301, %v385
      %v387 = vlaneseq
      %v388 = vshrl.u32 %v387, 7
      %v389 = vsub.s32 4, %v388
      %v390 = vrot.slane %v301, %v389
      %v391 = vlaneseq
      %v392 = vshrl.u32 %v391, 7
      %v393 = vsub.s32 5, %v392
      %v394 = vrot.slane %v301, %v393
      %v395 = vlaneseq
      %v396 = vshrl.u32 %v395, 7
      %v397 = vsub.s32 6, %v396
      %v398 = vrot.slane %v301, %v397
      %v399 = vlaneseq
      %v400 = vshrl.u32 %v399, 7
      %v401 = vsub.s32 7, %v400
      %v402 = vrot.slane %v301, %v401
      %v403 = vlaneseq
      %v404 = vshrl.u32 %v403, 7
      %v405 = vsub.s32 0, %v404
      %v406 = vrot.slane %v302, %v405
      %vm432 = vcmask 1040384
      %v433 = vsel %vm432, %v310, 0.0
      %v434 = vsel %vm432, %v314, 0.0
      %v435 = vadd.f32 %v433, %v434
      %v436 = vsel %vm432, %v318, 0.0
      %v437 = vadd.f32 %v435, %v436
      %v438 = vsel %vm432, %v322, 0.0
      %v439 = vadd.f32 %v437, %v438
      %v440 = vsel %vm432, %v326, 0.0
      %v441 = vadd.f32 %v439, %v440
      %v442 = vsel %vm432, %v330, 0.0
      %v443 = vadd.f32 %v441, %v442
      %v444 = vsel %vm432, %v334, 0.0
      %v445 = vadd.f32 %v443, %v444
      %v446 = vsel %vm432, %v338, 0.0
      %v447 = vadd.f32 %v445, %v446
      %v448 = vsel %vm432, %v342, 0.0
      %v449 = vadd.f32 %v447, %v448
      %v450 = vsel %vm432, %v346, 0.0
      %v451 = vadd.f32 %v449, %v450
      %v452 = vsel %vm432, %v350, 0.0
      %v453 = vadd.f32 %v451, %v452
      %v454 = vsel %vm432, %v354, 0.0
      %v455 = vadd.f32 %v453, %v454
      %v456 = vsel %vm432, %v358, 0.0
      %v457 = vadd.f32 %v455, %v456
      %v458 = vsel %vm432, %v362, 0.0
      %v459 = vadd.f32 %v457, %v458
      %v460 = vsel %vm432, %v366, 0.0
      %v461 = vadd.f32 %v459, %v460
      %v462 = vsel %vm432, %v370, 0.0
      %v463 = vadd.f32 %v461, %v462
      %v464 = vsel %vm432, %v374, 0.0
      %v465 = vadd.f32 %v463, %v464
      %v466 = vsel %vm432, %v378, 0.0
      %v467 = vadd.f32 %v465, %v466
      %v468 = vsel %vm432, %v382, 0.0
      %v469 = vadd.f32 %v467, %v468
      %v470 = vsel %vm432, %v386, 0.0
      %v471 = vadd.f32 %v469, %v470
      %v472 = vsel %vm432, %v390, 0.0
      %v473 = vadd.f32 %v471, %v472
      %v474 = vsel %vm432, %v394, 0.0
      %v475 = vadd.f32 %v473, %v474
      %v476 = vsel %vm432, %v398, 0.0
      %v477 = vadd.f32 %v475, %v476
      %v478 = vsel %vm432, %v402, 0.0
      %v479 = vadd.f32 %v477, %v478
      %v480 = vsel %vm432, %v406, 0.0
      %v481 = vadd.f32 %v479, %v480
      %482 = vadd.xlane.f32.xlu0 %v481
      %v483 = vpop.xlane.xlu0 %482
      %v484 = vrot.slane %v483, 4
      %v485 = vadd.f32 %v483, %v484
      %v486 = vrot.slane %v485, 2
      %v487 = vadd.f32 %v485, %v486
      %v488 = vrot.slane %v487, 1
      %v489 = vadd.f32 %v487, %v488
      %s490 = vtos %v489
      %v491 = vld [vmem:[#allocation3] sm:$0xff]
      %v492 = vld [vmem:[#allocation3 + $0x8] sm:$0xff]
      %v493 = vld [vmem:[#allocation3 + $0x10] sm:$0xff]
      %v494 = vld [vmem:[#allocation3 + $0x18] sm:$0x1]
      %v499 = vlaneseq
      %v500 = vshrl.u32 %v499, 7
      %v501 = vsub.s32 0, %v500
      %v502 = vrot.slane %v491, %v501
      %v503 = vlaneseq
      %v504 = vshrl.u32 %v503, 7
      %v505 = vsub.s32 1, %v504
      %v506 = vrot.slane %v491, %v505
      %v507 = vlaneseq
      %v508 = vshrl.u32 %v507, 7
      %v509 = vsub.s32 2, %v508
      %v510 = vrot.slane %v491, %v509
      %v511 = vlaneseq
      %v512 = vshrl.u32 %v511, 7
      %v513 = vsub.s32 3, %v512
      %v514 = vrot.slane %v491, %v513
      %v515 = vlaneseq
      %v516 = vshrl.u32 %v515, 7
      %v517 = vsub.s32 4, %v516
      %v518 = vrot.slane %v491, %v517
      %v519 = vlaneseq
      %v520 = vshrl.u32 %v519, 7
      %v521 = vsub.s32 5, %v520
      %v522 = vrot.slane %v491, %v521
      %v523 = vlaneseq
      %v524 = vshrl.u32 %v523, 7
      %v525 = vsub.s32 6, %v524
      %v526 = vrot.slane %v491, %v525
      %v527 = vlaneseq
      %v528 = vshrl.u32 %v527, 7
      %v529 = vsub.s32 7, %v528
      %v530 = vrot.slane %v491, %v529
      %v531 = vlaneseq
      %v532 = vshrl.u32 %v531, 7
      %v533 = vsub.s32 0, %v532
      %v534 = vrot.slane %v492, %v533
      %v535 = vlaneseq
      %v536 = vshrl.u32 %v535, 7
      %v537 = vsub.s32 1, %v536
      %v538 = vrot.slane %v492, %v537
      %v539 = vlaneseq
      %v540 = vshrl.u32 %v539, 7
      %v541 = vsub.s32 2, %v540
      %v542 = vrot.slane %v492, %v541
      %v543 = vlaneseq
      %v544 = vshrl.u32 %v543, 7
      %v545 = vsub.s32 3, %v544
      %v546 = vrot.slane %v492, %v545
      %v547 = vlaneseq
      %v548 = vshrl.u32 %v547, 7
      %v549 = vsub.s32 4, %v548
      %v550 = vrot.slane %v492, %v549
      %v551 = vlaneseq
      %v552 = vshrl.u32 %v551, 7
      %v553 = vsub.s32 5, %v552
      %v554 = vrot.slane %v492, %v553
      %v555 = vlaneseq
      %v556 = vshrl.u32 %v555, 7
      %v557 = vsub.s32 6, %v556
      %v558 = vrot.slane %v492, %v557
      %v559 = vlaneseq
      %v560 = vshrl.u32 %v559, 7
      %v561 = vsub.s32 7, %v560
      %v562 = vrot.slane %v492, %v561
      %v563 = vlaneseq
      %v564 = vshrl.u32 %v563, 7
      %v565 = vsub.s32 0, %v564
      %v566 = vrot.slane %v493, %v565
      %v567 = vlaneseq
      %v568 = vshrl.u32 %v567, 7
      %v569 = vsub.s32 1, %v568
      %v570 = vrot.slane %v493, %v569
      %v571 = vlaneseq
      %v572 = vshrl.u32 %v571, 7
      %v573 = vsub.s32 2, %v572
      %v574 = vrot.slane %v493, %v573
      %v575 = vlaneseq
      %v576 = vshrl.u32 %v575, 7
      %v577 = vsub.s32 3, %v576
      %v578 = vrot.slane %v493, %v577
      %v579 = vlaneseq
      %v580 = vshrl.u32 %v579, 7
      %v581 = vsub.s32 4, %v580
      %v582 = vrot.slane %v493, %v581
      %v583 = vlaneseq
      %v584 = vshrl.u32 %v583, 7
      %v585 = vsub.s32 5, %v584
      %v586 = vrot.slane %v493, %v585
      %v587 = vlaneseq
      %v588 = vshrl.u32 %v587, 7
      %v589 = vsub.s32 6, %v588
      %v590 = vrot.slane %v493, %v589
      %v591 = vlaneseq
      %v592 = vshrl.u32 %v591, 7
      %v593 = vsub.s32 7, %v592
      %v594 = vrot.slane %v493, %v593
      %v595 = vlaneseq
      %v596 = vshrl.u32 %v595, 7
      %v597 = vsub.s32 0, %v596
      %v598 = vrot.slane %v494, %v597
      %v624 = vsel %vm432, %v502, 0.0
      %v625 = vsel %vm432, %v506, 0.0
      %v626 = vadd.f32 %v624, %v625
      %v627 = vsel %vm432, %v510, 0.0
      %v628 = vadd.f32 %v626, %v627
      %v629 = vsel %vm432, %v514, 0.0
      %v630 = vadd.f32 %v628, %v629
      %v631 = vsel %vm432, %v518, 0.0
      %v632 = vadd.f32 %v630, %v631
      %v633 = vsel %vm432, %v522, 0.0
      %v634 = vadd.f32 %v632, %v633
      %v635 = vsel %vm432, %v526, 0.0
      %v636 = vadd.f32 %v634, %v635
      %v637 = vsel %vm432, %v530, 0.0
      %v638 = vadd.f32 %v636, %v637
      %v639 = vsel %vm432, %v534, 0.0
      %v640 = vadd.f32 %v638, %v639
      %v641 = vsel %vm432, %v538, 0.0
      %v642 = vadd.f32 %v640, %v641
      %v643 = vsel %vm432, %v542, 0.0
      %v644 = vadd.f32 %v642, %v643
      %v645 = vsel %vm432, %v546, 0.0
      %v646 = vadd.f32 %v644, %v645
      %v647 = vsel %vm432, %v550, 0.0
      %v648 = vadd.f32 %v646, %v647
      %v649 = vsel %vm432, %v554, 0.0
      %v650 = vadd.f32 %v648, %v649
      %v651 = vsel %vm432, %v558, 0.0
      %v652 = vadd.f32 %v650, %v651
      %v653 = vsel %vm432, %v562, 0.0
      %v654 = vadd.f32 %v652, %v653
      %v655 = vsel %vm432, %v566, 0.0
      %v656 = vadd.f32 %v654, %v655
      %v657 = vsel %vm432, %v570, 0.0
      %v658 = vadd.f32 %v656, %v657
      %v659 = vsel %vm432, %v574, 0.0
      %v660 = vadd.f32 %v658, %v659
      %v661 = vsel %vm432, %v578, 0.0
      %v662 = vadd.f32 %v660, %v661
      %v663 = vsel %vm432, %v582, 0.0
      %v664 = vadd.f32 %v662, %v663
      %v665 = vsel %vm432, %v586, 0.0
      %v666 = vadd.f32 %v664, %v665
      %v667 = vsel %vm432, %v590, 0.0
      %v668 = vadd.f32 %v666, %v667
      %v669 = vsel %vm432, %v594, 0.0
      %v670 = vadd.f32 %v668, %v669
      %v671 = vsel %vm432, %v598, 0.0
      %v672 = vadd.f32 %v670, %v671
      %673 = vadd.xlane.f32.xlu0 %v672
      %v674 = vpop.xlane.xlu0 %673
      %v675 = vrot.slane %v674, 4
      %v676 = vadd.f32 %v674, %v675
      %v677 = vrot.slane %v676, 2
      %v678 = vadd.f32 %v676, %v677
      %v679 = vrot.slane %v678, 1
      %v680 = vadd.f32 %v678, %v679
      %s681 = vtos %v680
      %v682 = vstv %s681
      %v683 = vrsqrt.pop %v682
      %v684 = vmul.f32 %v682, %v683
      %vm685 = vcmp.eq.f32.partialorder %v682, inf
      %v686 = vsel %vm685, %v682, %v684
      %vm687 = vcmp.eq.f32.partialorder %v682, 0.0
      %v688 = vand.u32 %v682, 2147483648
      %v689 = vsel %vm687, %v688, %v686
      %s690 = vtos %v689
      %s691 = smul.f32 %s690, 2.828427
      %v692 = vstv %s691
      %v693 = vrcp.pop %v692
      %s694 = vtos %v693
      %s695 = smul.f32 %s490, %s694
      %v696 = vstv %s695
      %v697 = vlog2.pop %v696
      %v698 = vmul.f32 %v697, 0.6931472
      %s699 = vtos %v698
      %s700 = ssub.f32 0.0, %s699
      %s701 = scalar_lea.smem [#allocation9], 0
      %702 = sst [smem:[%s701]] %s700
    $region25: #{tpu_custom_call.1} parent=1 // pred_fallthru
      _
    // Predicated region
    $region26: #{tpu_custom_call.1} parent=1 // pred_check
      _
    $region27: #{tpu_custom_call.1} parent=1 // pred_check_branch
      %704 = sbr.rel (0) target = $region29
    $region28: #{tpu_custom_call.1} parent=1 // pred_region
      %s706 = ssub.s32 16, 16
      %707 = vsyncadd [#allocation6], %s706
      %710 = dma.smem_to_hbm [#allocation9], 16, %s2, [#allocation6]
    $region29: #{tpu_custom_call.1} parent=1 // pred_fallthru
      _
    // Predicated region
    $region30: #{tpu_custom_call.1} parent=1 // pred_check
      _
    $region31: #{tpu_custom_call.1} parent=1 // pred_check_branch
      %712 = sbr.rel (0) target = $region33
    $region32: #{tpu_custom_call.1} parent=1 // pred_region
      %713 = dma.done [#allocation6], 16
    $region33: #{tpu_custom_call.1} parent=1 // pred_fallthru
      _
    %714 = sfence
    %715 = vsyncpa [#allocation5], 1
    %716 = vsyncpa [#allocation8], 1
    %717 = vsyncpa [#allocation6], 1

</llo_original>
